<compile_context>
chip_gen: v7x
topology: tpu7x:2x2x1
jax: 0.10.0
libtpu: 0.0.40
codegen_flags: <defaults>
</compile_context>

<pallas_src>
import jax
import jax.numpy as jnp
from jax import lax
from jax.experimental import pallas as pl
from jax.experimental.pallas import tpu as pltpu

# ---- small synthetic config (consistent with a Qwen2-VL transformer layer) ----
SEQ_LENGTH = 8
HIDDEN_SIZE = 64
NUM_ATTENTION_HEADS = 4
NUM_KEY_VALUE_HEADS = 2
HEAD_DIM = HIDDEN_SIZE // NUM_ATTENTION_HEADS          # 16
GROUP = NUM_ATTENTION_HEADS // NUM_KEY_VALUE_HEADS     # 2
Q_DIM = NUM_ATTENTION_HEADS * HEAD_DIM                 # 64
KV_DIM = NUM_KEY_VALUE_HEADS * HEAD_DIM                # 32
QKV_DIM = Q_DIM + 2 * KV_DIM                           # 128 (lane-dense)
PROJ_DIM = 2 * QKV_DIM                                 # 256: [qkv | rotate_half(qkv)]
PACKED_OUT = HIDDEN_SIZE + 2 * KV_DIM                  # 128 (lane-dense)
INTERMEDIATE_SIZE = 128
RMS_EPS = 1e-6
ROPE_THETA = 1000000.0


def _rms_norm(x, w):
    var = jnp.mean(x * x, axis=-1, keepdims=True)
    return x * lax.rsqrt(var + RMS_EPS) * w


def _rotate_half(x):
    h = x.shape[-1] // 2
    return jnp.concatenate([-x[..., h:], x[..., :h]], axis=-1)


def _block_kernel(x_ref, mask_ref, cs_cos_ref, cs_sin_ref,
                  ln1_ref, ln2_ref,
                  wqkvr_ref, bqkvr_ref, wo_ref, wgu_ref, wd_ref,
                  out_ref):
    x = x_ref[...]                                        # (S, H) f32

    # ---- input RMSNorm (f32 VPU); cast to bf16 only at the MXU input ----
    xn = _rms_norm(x, ln1_ref[...]).astype(jnp.bfloat16)

    # ---- fused QKV + pre-rotated copy: ONE (64,256) bf16 matmul.
    #      rotate_half is pre-folded into the weights, so RoPE = 2 muls + 1 add.
    proj = jnp.dot(xn, wqkvr_ref[...],
                   preferred_element_type=jnp.float32) + bqkvr_ref[...]   # (S, 256)
    qkv_r = (proj[:, :QKV_DIM] * cs_cos_ref[...]
             + proj[:, QKV_DIM:] * cs_sin_ref[...])       # (S, 128) f32; V untouched

    mask = mask_ref[...]                                  # (S, S) additive
    scale = 1.0 / (HEAD_DIM ** 0.5)
    qkv_b = qkv_r.astype(jnp.bfloat16)                    # single cast for MXU inputs

    # ---- head-batched GQA attention: one scores matmul, one softmax, one PV ----
    q_h = jnp.stack(
        [qkv_b[:, h * HEAD_DIM:(h + 1) * HEAD_DIM]
         for h in range(NUM_ATTENTION_HEADS)], axis=0)                    # (NH,S,HD)
    k_h = jnp.stack(
        [qkv_b[:, Q_DIM + (h // GROUP) * HEAD_DIM:
               Q_DIM + (h // GROUP + 1) * HEAD_DIM]
         for h in range(NUM_ATTENTION_HEADS)], axis=0)                    # (NH,S,HD)
    v_h = jnp.stack(
        [qkv_b[:, Q_DIM + KV_DIM + (h // GROUP) * HEAD_DIM:
               Q_DIM + KV_DIM + (h // GROUP + 1) * HEAD_DIM]
         for h in range(NUM_ATTENTION_HEADS)], axis=0)                    # (NH,S,HD)

    scores = lax.dot_general(q_h, k_h, (((2,), (2,)), ((0,), (0,))),
                             preferred_element_type=jnp.float32)          # (NH,S,S)
    scores = scores * scale + mask[None, :, :]
    scores = scores - jnp.max(scores, axis=-1, keepdims=True)
    p = jnp.exp(scores)
    p = p * pl.reciprocal(jnp.sum(p, axis=-1, keepdims=True), approx=True)
    ctx = lax.dot_general(p.astype(jnp.bfloat16), v_h,
                          (((2,), (1,)), ((0,), (0,))),
                          preferred_element_type=jnp.float32)             # (NH,S,HD)

    # ---- o_proj: ONE (S,64)x(64,64) matmul (lane concat lands on idle XLU) ----
    ctx_flat = jnp.concatenate(
        [ctx[h] for h in range(NUM_ATTENTION_HEADS)], axis=-1)            # (S, Q_DIM)
    attn_proj = jnp.dot(ctx_flat.astype(jnp.bfloat16), wo_ref[...],
                        preferred_element_type=jnp.float32)

    h1 = x + attn_proj

    # ---- post-attention RMSNorm + fused SwiGLU MLP (bf16 MXU, f32 VPU/EUP) ----
    hn = _rms_norm(h1, ln2_ref[...]).astype(jnp.bfloat16)
    gu = jnp.dot(hn, wgu_ref[...], preferred_element_type=jnp.float32)    # (S, 2*I)
    gate = gu[:, :INTERMEDIATE_SIZE]
    up = gu[:, INTERMEDIATE_SIZE:]
    act = gate * jax.nn.sigmoid(gate) * up
    mlp = jnp.dot(act.astype(jnp.bfloat16), wd_ref[...],
                  preferred_element_type=jnp.float32)

    hidden = h1 + mlp

    # ---- single packed lane-dense (S, 128) store: [hidden | K | V] ----
    out_ref[...] = jnp.concatenate([hidden, qkv_r[:, Q_DIM:]], axis=-1)


def _full_spec(shape):
    return pl.BlockSpec(shape, lambda i: (0,) * len(shape))


def make_rope_tables():
    inv_freq = 1.0 / (ROPE_THETA ** (jnp.arange(0, HEAD_DIM, 2, dtype=jnp.float32)
                                     / HEAD_DIM))
    pos = jnp.arange(SEQ_LENGTH, dtype=jnp.float32)
    freqs = pos[:, None] * inv_freq[None, :]               # (S, HD/2)
    emb = jnp.concatenate([freqs, freqs], axis=-1)         # (S, HD)
    return jnp.cos(emb), jnp.sin(emb)


def init_params(key):
    ks = jax.random.split(key, 10)
    s = 0.02
    return {
        "ln1": jnp.ones((1, HIDDEN_SIZE), jnp.float32),
        "ln2": jnp.ones((1, HIDDEN_SIZE), jnp.float32),
        "wq": s * jax.random.normal(ks[0], (HIDDEN_SIZE, Q_DIM), jnp.float32),
        "bq": s * jax.random.normal(ks[1], (1, Q_DIM), jnp.float32),
        "wk": s * jax.random.normal(ks[2], (HIDDEN_SIZE, KV_DIM), jnp.float32),
        "bk": s * jax.random.normal(ks[3], (1, KV_DIM), jnp.float32),
        "wv": s * jax.random.normal(ks[4], (HIDDEN_SIZE, KV_DIM), jnp.float32),
        "bv": s * jax.random.normal(ks[5], (1, KV_DIM), jnp.float32),
        "wo": s * jax.random.normal(ks[6], (Q_DIM, HIDDEN_SIZE), jnp.float32),
        "wg": s * jax.random.normal(ks[7], (HIDDEN_SIZE, INTERMEDIATE_SIZE), jnp.float32),
        "wu": s * jax.random.normal(ks[8], (HIDDEN_SIZE, INTERMEDIATE_SIZE), jnp.float32),
        "wd": s * jax.random.normal(ks[9], (INTERMEDIATE_SIZE, HIDDEN_SIZE), jnp.float32),
    }


def prepare_block_params(params):
    """Hoisted, one-time constant construction: fused/bf16 weights, RoPE fold, tables."""
    cos, sin = make_rope_tables()                           # (S, HD)

    # cos/sin pre-tiled over the fused QKV lane layout; V lanes pass through
    cs_cos = jnp.concatenate(
        [jnp.tile(cos, (1, NUM_ATTENTION_HEADS)),
         jnp.tile(cos, (1, NUM_KEY_VALUE_HEADS)),
         jnp.ones((SEQ_LENGTH, KV_DIM), jnp.float32)], axis=-1)          # (S, 128)
    cs_sin = jnp.concatenate(
        [jnp.tile(sin, (1, NUM_ATTENTION_HEADS)),
         jnp.tile(sin, (1, NUM_KEY_VALUE_HEADS)),
         jnp.zeros((SEQ_LENGTH, KV_DIM), jnp.float32)], axis=-1)         # (S, 128)

    # block-diagonal rotate_half matrix: x @ R == rotate_half(x) per head.
    # Used only here to fold RoPE into the projection weights (exact: signed perm).
    half = HEAD_DIM // 2
    R = jnp.block([[jnp.zeros((half, half), jnp.float32), jnp.eye(half, dtype=jnp.float32)],
                   [-jnp.eye(half, dtype=jnp.float32), jnp.zeros((half, half), jnp.float32)]])
    rot = jnp.zeros((QKV_DIM, QKV_DIM), jnp.float32)
    rot = rot.at[:Q_DIM + KV_DIM, :Q_DIM + KV_DIM].set(
        jnp.kron(jnp.eye(NUM_ATTENTION_HEADS + NUM_KEY_VALUE_HEADS,
                         dtype=jnp.float32), R))

    w_qkv = jnp.concatenate([params["wq"], params["wk"], params["wv"]], axis=1)  # (H,128)
    b_qkv = jnp.concatenate([params["bq"], params["bk"], params["bv"]], axis=1)  # (1,128)
    w_qkvr = jnp.concatenate([w_qkv, w_qkv @ rot], axis=1).astype(jnp.bfloat16)  # (H,256)
    b_qkvr = jnp.concatenate([b_qkv, b_qkv @ rot], axis=1)                       # (1,256) f32
    w_gu = jnp.concatenate([params["wg"], params["wu"]], axis=1).astype(jnp.bfloat16)

    return {
        "cs_cos": cs_cos, "cs_sin": cs_sin,
        "ln1": params["ln1"], "ln2": params["ln2"],
        "w_qkvr": w_qkvr, "b_qkvr": b_qkvr,
        "wo": params["wo"].astype(jnp.bfloat16),
        "w_gu": w_gu,
        "wd": params["wd"].astype(jnp.bfloat16),
    }


def qwen2vl_block(hidden_states, position_ids, attention_mask, prepped):
    # hidden_states: (1, S, H); attention_mask: (1, 1, S, S); position_ids: (3, 1, S)
    # position_ids kept for signature parity; RoPE uses the precomputed cos/sin.
    del position_ids
    x = hidden_states[0].astype(jnp.float32)                # (S, H)
    mask = attention_mask[0, 0].astype(jnp.float32)         # (S, S)

    in_arrays = [x, mask, prepped["cs_cos"], prepped["cs_sin"],
                 prepped["ln1"], prepped["ln2"],
                 prepped["w_qkvr"], prepped["b_qkvr"], prepped["wo"],
                 prepped["w_gu"], prepped["wd"]]
    in_specs = [_full_spec(a.shape) for a in in_arrays]

    packed = pl.pallas_call(
        _block_kernel,
        out_shape=jax.ShapeDtypeStruct((SEQ_LENGTH, PACKED_OUT), jnp.float32),
        grid=(1,),
        in_specs=in_specs,
        out_specs=_full_spec((SEQ_LENGTH, PACKED_OUT)),
        compiler_params=pltpu.CompilerParams(
            dimension_semantics=("arbitrary",)),
    )(*in_arrays)

    hidden_out = packed[:, :HIDDEN_SIZE][None, :, :]                  # (1, S, H)
    k_flat = packed[:, HIDDEN_SIZE:HIDDEN_SIZE + KV_DIM]              # (S, NKV*HD)
    v_flat = packed[:, HIDDEN_SIZE + KV_DIM:]                         # (S, NKV*HD)
    present_k = jnp.transpose(
        k_flat.reshape(SEQ_LENGTH, NUM_KEY_VALUE_HEADS, HEAD_DIM), (1, 0, 2))[None]
    present_v = jnp.transpose(
        v_flat.reshape(SEQ_LENGTH, NUM_KEY_VALUE_HEADS, HEAD_DIM), (1, 0, 2))[None]
    return hidden_out, present_k, present_v


def _reference(hidden_states, attention_mask, params):
    # pure-JAX f32 reference with the original per-head formulation
    x = hidden_states[0].astype(jnp.float32)
    mask = attention_mask[0, 0].astype(jnp.float32)
    cos, sin = make_rope_tables()
    xn = _rms_norm(x, params["ln1"])
    q = (xn @ params["wq"] + params["bq"]).reshape(SEQ_LENGTH, NUM_ATTENTION_HEADS, HEAD_DIM)
    k = (xn @ params["wk"] + params["bk"]).reshape(SEQ_LENGTH, NUM_KEY_VALUE_HEADS, HEAD_DIM)
    v = (xn @ params["wv"] + params["bv"]).reshape(SEQ_LENGTH, NUM_KEY_VALUE_HEADS, HEAD_DIM)
    q = q * cos[:, None, :] + _rotate_half(q) * sin[:, None, :]
    k = k * cos[:, None, :] + _rotate_half(k) * sin[:, None, :]
    k_rep = jnp.repeat(k, GROUP, axis=1)
    v_rep = jnp.repeat(v, GROUP, axis=1)
    scores = jnp.einsum("qhd,khd->hqk", q, k_rep) / (HEAD_DIM ** 0.5) + mask
    p = jax.nn.softmax(scores, axis=-1)
    ctx = jnp.einsum("hqk,khd->qhd", p, v_rep).reshape(SEQ_LENGTH, -1)
    h1 = x + ctx @ params["wo"]
    hn = _rms_norm(h1, params["ln2"])
    g = hn @ params["wg"]
    u = hn @ params["wu"]
    hidden = h1 + (g * jax.nn.sigmoid(g) * u) @ params["wd"]
    return (hidden[None],
            jnp.transpose(k, (1, 0, 2))[None],
            jnp.transpose(v, (1, 0, 2))[None])


if __name__ == "__main__":
    key = jax.random.PRNGKey(0)
    k_x, k_p = jax.random.split(key)

    hidden_states = jax.random.normal(k_x, (1, SEQ_LENGTH, HIDDEN_SIZE), jnp.float32)
    position_ids = jnp.broadcast_to(
        jnp.arange(SEQ_LENGTH, dtype=jnp.int32)[None, None, :], (3, 1, SEQ_LENGTH))
    causal = jnp.tril(jnp.ones((SEQ_LENGTH, SEQ_LENGTH), jnp.float32))
    attention_mask = jnp.where(causal == 1.0, 0.0, -1e9)[None, None, :, :]

    params = init_params(k_p)
    prepped = prepare_block_params(params)          # hoisted one-time constant prep

    h, pk, pv = qwen2vl_block(hidden_states, position_ids, attention_mask, prepped)
    jax.block_until_ready((h, pk, pv))

    assert h.shape == (1, SEQ_LENGTH, HIDDEN_SIZE)
    assert pk.shape == (1, NUM_KEY_VALUE_HEADS, SEQ_LENGTH, HEAD_DIM)
    assert pv.shape == (1, NUM_KEY_VALUE_HEADS, SEQ_LENGTH, HEAD_DIM)

    h_ref, pk_ref, pv_ref = _reference(hidden_states, attention_mask, params)
    assert jnp.allclose(h, h_ref, atol=1e-2, rtol=1e-2)
    assert jnp.allclose(pk, pk_ref, atol=1e-2, rtol=1e-2)
    assert jnp.allclose(pv, pv_ref, atol=1e-2, rtol=1e-2)
    print("KERNEL_OK")
</pallas_src>

<mosaic_0001>
module attributes {stable_mosaic.version = 11 : i64} {
  func.func @_block_kernel(%arg0: i32, %arg1: memref<8x64xf32, #tpu.memory_space<vmem>>, %arg2: memref<8x8xf32, #tpu.memory_space<vmem>>, %arg3: memref<8x128xf32, #tpu.memory_space<vmem>>, %arg4: memref<8x128xf32, #tpu.memory_space<vmem>>, %arg5: memref<1x64xf32, #tpu.memory_space<vmem>>, %arg6: memref<1x64xf32, #tpu.memory_space<vmem>>, %arg7: memref<64x256xbf16, #tpu.memory_space<vmem>>, %arg8: memref<1x256xf32, #tpu.memory_space<vmem>>, %arg9: memref<64x64xbf16, #tpu.memory_space<vmem>>, %arg10: memref<64x256xbf16, #tpu.memory_space<vmem>>, %arg11: memref<128x64xbf16, #tpu.memory_space<vmem>>, %arg12: memref<8x128xf32, #tpu.memory_space<vmem>>) attributes {dimension_semantics = [#tpu.dimension_semantics<arbitrary>], iteration_bounds = array<i64: 1>, scalar_prefetch = 0 : i64, scratch_operands = 0 : i64, tpu.core_type = #tpu.core_type<tc>, window_params = [{pipeline_mode = #tpu.pipeline_mode<synchronous>, transform_indices = @transform_0, window_bounds = array<i64: 8, 64>}, {pipeline_mode = #tpu.pipeline_mode<synchronous>, transform_indices = @transform_1, window_bounds = array<i64: 8, 8>}, {pipeline_mode = #tpu.pipeline_mode<synchronous>, transform_indices = @transform_2, window_bounds = array<i64: 8, 128>}, {pipeline_mode = #tpu.pipeline_mode<synchronous>, transform_indices = @transform_3, window_bounds = array<i64: 8, 128>}, {pipeline_mode = #tpu.pipeline_mode<synchronous>, transform_indices = @transform_4, window_bounds = array<i64: 1, 64>}, {pipeline_mode = #tpu.pipeline_mode<synchronous>, transform_indices = @transform_5, window_bounds = array<i64: 1, 64>}, {pipeline_mode = #tpu.pipeline_mode<synchronous>, transform_indices = @transform_6, window_bounds = array<i64: 64, 256>}, {pipeline_mode = #tpu.pipeline_mode<synchronous>, transform_indices = @transform_7, window_bounds = array<i64: 1, 256>}, {pipeline_mode = #tpu.pipeline_mode<synchronous>, transform_indices = @transform_8, window_bounds = array<i64: 64, 64>}, {pipeline_mode = #tpu.pipeline_mode<synchronous>, transform_indices = @transform_9, window_bounds = array<i64: 64, 256>}, {pipeline_mode = #tpu.pipeline_mode<synchronous>, transform_indices = @transform_10, window_bounds = array<i64: 128, 64>}, {pipeline_mode = #tpu.pipeline_mode<synchronous>, transform_indices = @transform_11, window_bounds = array<i64: 8, 128>}]} {
    %c0 = arith.constant 0 : index
    %c0_0 = arith.constant 0 : index
    %0 = vector.load %arg1[%c0, %c0_0] : memref<8x64xf32, #tpu.memory_space<vmem>>, vector<8x64xf32>
    %c0_1 = arith.constant 0 : index
    %c0_2 = arith.constant 0 : index
    %1 = vector.load %arg5[%c0_1, %c0_2] : memref<1x64xf32, #tpu.memory_space<vmem>>, vector<1x64xf32>
    %2 = arith.mulf %0, %0 : vector<8x64xf32>
    %cst = arith.constant dense<0.000000e+00> : vector<8xf32>
    %3 = vector.multi_reduction <add>, %2, %cst [1] : vector<8x64xf32> to vector<8xf32>
    %4 = vector.shape_cast %3 : vector<8xf32> to vector<8x1xf32>
    %cst_3 = arith.constant 6.400000e+01 : f32
    %5 = vector.broadcast %cst_3 : f32 to vector<8x1xf32>
    %6 = arith.divf %4, %5 : vector<8x1xf32>
    %cst_4 = arith.constant 9.99999997E-7 : f32
    %7 = vector.broadcast %cst_4 : f32 to vector<8x1xf32>
    %8 = arith.addf %6, %7 : vector<8x1xf32>
    %9 = math.rsqrt %8 : vector<8x1xf32>
    %10 = vector.broadcast %9 : vector<8x1xf32> to vector<8x64xf32>
    %11 = arith.mulf %0, %10 : vector<8x64xf32>
    %12 = vector.broadcast %1 : vector<1x64xf32> to vector<8x64xf32>
    %13 = arith.mulf %11, %12 : vector<8x64xf32>
    %14 = arith.truncf %13 : vector<8x64xf32> to vector<8x64xbf16>
    %c0_5 = arith.constant 0 : index
    %c0_6 = arith.constant 0 : index
    %15 = vector.load %arg7[%c0_5, %c0_6] : memref<64x256xbf16, #tpu.memory_space<vmem>>, vector<64x256xbf16>
    %cst_7 = arith.constant dense<0.000000e+00> : vector<8x256xf32>
    %16 = tpu.matmul %14, %15, %cst_7 {dimension_numbers = #tpu.dot_dimension_numbers<[1], [0], [0], [1], [0, 0, 1, 1], [], []>} : vector<8x64xbf16>, vector<64x256xbf16>, vector<8x256xf32> -> vector<8x256xf32>
    %c0_8 = arith.constant 0 : index
    %c0_9 = arith.constant 0 : index
    %17 = vector.load %arg8[%c0_8, %c0_9] : memref<1x256xf32, #tpu.memory_space<vmem>>, vector<1x256xf32>
    %18 = vector.broadcast %17 : vector<1x256xf32> to vector<8x256xf32>
    %19 = arith.addf %16, %18 : vector<8x256xf32>
    %20 = vector.extract_strided_slice %19 {offsets = [0, 0], sizes = [8, 128], strides = [1, 1]} : vector<8x256xf32> to vector<8x128xf32>
    %c0_10 = arith.constant 0 : index
    %c0_11 = arith.constant 0 : index
    %21 = vector.load %arg3[%c0_10, %c0_11] : memref<8x128xf32, #tpu.memory_space<vmem>>, vector<8x128xf32>
    %22 = arith.mulf %20, %21 : vector<8x128xf32>
    %23 = vector.extract_strided_slice %19 {offsets = [0, 128], sizes = [8, 128], strides = [1, 1]} : vector<8x256xf32> to vector<8x128xf32>
    %c0_12 = arith.constant 0 : index
    %c0_13 = arith.constant 0 : index
    %24 = vector.load %arg4[%c0_12, %c0_13] : memref<8x128xf32, #tpu.memory_space<vmem>>, vector<8x128xf32>
    %25 = arith.mulf %23, %24 : vector<8x128xf32>
    %26 = arith.addf %22, %25 : vector<8x128xf32>
    %c0_14 = arith.constant 0 : index
    %c0_15 = arith.constant 0 : index
    %27 = vector.load %arg2[%c0_14, %c0_15] : memref<8x8xf32, #tpu.memory_space<vmem>>, vector<8x8xf32>
    %28 = arith.truncf %26 : vector<8x128xf32> to vector<8x128xbf16>
    %29 = vector.extract_strided_slice %28 {offsets = [0, 0], sizes = [8, 16], strides = [1, 1]} : vector<8x128xbf16> to vector<8x16xbf16>
    %30 = vector.extract_strided_slice %28 {offsets = [0, 16], sizes = [8, 16], strides = [1, 1]} : vector<8x128xbf16> to vector<8x16xbf16>
    %31 = vector.extract_strided_slice %28 {offsets = [0, 32], sizes = [8, 16], strides = [1, 1]} : vector<8x128xbf16> to vector<8x16xbf16>
    %32 = vector.extract_strided_slice %28 {offsets = [0, 48], sizes = [8, 16], strides = [1, 1]} : vector<8x128xbf16> to vector<8x16xbf16>
    %33 = vector.shape_cast %29 : vector<8x16xbf16> to vector<1x8x16xbf16>
    %34 = vector.shape_cast %30 : vector<8x16xbf16> to vector<1x8x16xbf16>
    %35 = vector.shape_cast %31 : vector<8x16xbf16> to vector<1x8x16xbf16>
    %36 = vector.shape_cast %32 : vector<8x16xbf16> to vector<1x8x16xbf16>
    %37 = tpu.concatenate %33, %34, %35, %36 in 0 : vector<1x8x16xbf16>, vector<1x8x16xbf16>, vector<1x8x16xbf16>, vector<1x8x16xbf16> -> vector<4x8x16xbf16>
    %38 = vector.extract_strided_slice %28 {offsets = [0, 64], sizes = [8, 16], strides = [1, 1]} : vector<8x128xbf16> to vector<8x16xbf16>
    %39 = vector.extract_strided_slice %28 {offsets = [0, 64], sizes = [8, 16], strides = [1, 1]} : vector<8x128xbf16> to vector<8x16xbf16>
    %40 = vector.extract_strided_slice %28 {offsets = [0, 80], sizes = [8, 16], strides = [1, 1]} : vector<8x128xbf16> to vector<8x16xbf16>
    %41 = vector.extract_strided_slice %28 {offsets = [0, 80], sizes = [8, 16], strides = [1, 1]} : vector<8x128xbf16> to vector<8x16xbf16>
    %42 = vector.shape_cast %38 : vector<8x16xbf16> to vector<1x8x16xbf16>
    %43 = vector.shape_cast %39 : vector<8x16xbf16> to vector<1x8x16xbf16>
    %44 = vector.shape_cast %40 : vector<8x16xbf16> to vector<1x8x16xbf16>
    %45 = vector.shape_cast %41 : vector<8x16xbf16> to vector<1x8x16xbf16>
    %46 = tpu.concatenate %42, %43, %44, %45 in 0 : vector<1x8x16xbf16>, vector<1x8x16xbf16>, vector<1x8x16xbf16>, vector<1x8x16xbf16> -> vector<4x8x16xbf16>
    %47 = vector.extract_strided_slice %28 {offsets = [0, 96], sizes = [8, 16], strides = [1, 1]} : vector<8x128xbf16> to vector<8x16xbf16>
    %48 = vector.extract_strided_slice %28 {offsets = [0, 96], sizes = [8, 16], strides = [1, 1]} : vector<8x128xbf16> to vector<8x16xbf16>
    %49 = vector.extract_strided_slice %28 {offsets = [0, 112], sizes = [8, 16], strides = [1, 1]} : vector<8x128xbf16> to vector<8x16xbf16>
    %50 = vector.extract_strided_slice %28 {offsets = [0, 112], sizes = [8, 16], strides = [1, 1]} : vector<8x128xbf16> to vector<8x16xbf16>
    %51 = vector.shape_cast %47 : vector<8x16xbf16> to vector<1x8x16xbf16>
    %52 = vector.shape_cast %48 : vector<8x16xbf16> to vector<1x8x16xbf16>
    %53 = vector.shape_cast %49 : vector<8x16xbf16> to vector<1x8x16xbf16>
    %54 = vector.shape_cast %50 : vector<8x16xbf16> to vector<1x8x16xbf16>
    %55 = tpu.concatenate %51, %52, %53, %54 in 0 : vector<1x8x16xbf16>, vector<1x8x16xbf16>, vector<1x8x16xbf16>, vector<1x8x16xbf16> -> vector<4x8x16xbf16>
    %cst_16 = arith.constant dense<0.000000e+00> : vector<4x8x8xf32>
    %56 = tpu.matmul %37, %46, %cst_16 {dimension_numbers = #tpu.dot_dimension_numbers<[2], [2], [1], [1], [0, 0, 0, 1, 1, 1], [0], [0]>} : vector<4x8x16xbf16>, vector<4x8x16xbf16>, vector<4x8x8xf32> -> vector<4x8x8xf32>
    %cst_17 = arith.constant 2.500000e-01 : f32
    %57 = vector.broadcast %cst_17 : f32 to vector<4x8x8xf32>
    %58 = arith.mulf %56, %57 : vector<4x8x8xf32>
    %59 = vector.shape_cast %27 : vector<8x8xf32> to vector<1x8x8xf32>
    %60 = vector.broadcast %59 : vector<1x8x8xf32> to vector<4x8x8xf32>
    %61 = arith.addf %58, %60 : vector<4x8x8xf32>
    %cst_18 = arith.constant dense<0xFF800000> : vector<4x8xf32>
    %62 = vector.multi_reduction <maximumf>, %61, %cst_18 [2] : vector<4x8x8xf32> to vector<4x8xf32>
    %63 = vector.shape_cast %62 : vector<4x8xf32> to vector<4x8x1xf32>
    %64 = vector.broadcast %63 : vector<4x8x1xf32> to vector<4x8x8xf32>
    %65 = arith.subf %61, %64 : vector<4x8x8xf32>
    %66 = math.exp %65 : vector<4x8x8xf32>
    %cst_19 = arith.constant dense<0.000000e+00> : vector<4x8xf32>
    %67 = vector.multi_reduction <add>, %66, %cst_19 [2] : vector<4x8x8xf32> to vector<4x8xf32>
    %68 = vector.shape_cast %67 : vector<4x8xf32> to vector<4x8x1xf32>
    %69 = tpu.reciprocal %68 {approx = true} : vector<4x8x1xf32> -> vector<4x8x1xf32>
    %70 = vector.broadcast %69 : vector<4x8x1xf32> to vector<4x8x8xf32>
    %71 = arith.mulf %66, %70 : vector<4x8x8xf32>
    %72 = arith.truncf %71 : vector<4x8x8xf32> to vector<4x8x8xbf16>
    %cst_20 = arith.constant dense<0.000000e+00> : vector<4x8x16xf32>
    %73 = tpu.matmul %72, %55, %cst_20 {dimension_numbers = #tpu.dot_dimension_numbers<[2], [1], [1], [2], [0, 0, 0, 1, 1, 2], [0], [0]>} : vector<4x8x8xbf16>, vector<4x8x16xbf16>, vector<4x8x16xf32> -> vector<4x8x16xf32>
    %74 = vector.extract_strided_slice %73 {offsets = [0, 0, 0], sizes = [1, 8, 16], strides = [1, 1, 1]} : vector<4x8x16xf32> to vector<1x8x16xf32>
    %75 = vector.shape_cast %74 : vector<1x8x16xf32> to vector<8x16xf32>
    %76 = vector.extract_strided_slice %73 {offsets = [1, 0, 0], sizes = [1, 8, 16], strides = [1, 1, 1]} : vector<4x8x16xf32> to vector<1x8x16xf32>
    %77 = vector.shape_cast %76 : vector<1x8x16xf32> to vector<8x16xf32>
    %78 = vector.extract_strided_slice %73 {offsets = [2, 0, 0], sizes = [1, 8, 16], strides = [1, 1, 1]} : vector<4x8x16xf32> to vector<1x8x16xf32>
    %79 = vector.shape_cast %78 : vector<1x8x16xf32> to vector<8x16xf32>
    %80 = vector.extract_strided_slice %73 {offsets = [3, 0, 0], sizes = [1, 8, 16], strides = [1, 1, 1]} : vector<4x8x16xf32> to vector<1x8x16xf32>
    %81 = vector.shape_cast %80 : vector<1x8x16xf32> to vector<8x16xf32>
    %82 = tpu.concatenate %75, %77, %79, %81 in 1 : vector<8x16xf32>, vector<8x16xf32>, vector<8x16xf32>, vector<8x16xf32> -> vector<8x64xf32>
    %83 = arith.truncf %82 : vector<8x64xf32> to vector<8x64xbf16>
    %c0_21 = arith.constant 0 : index
    %c0_22 = arith.constant 0 : index
    %84 = vector.load %arg9[%c0_21, %c0_22] : memref<64x64xbf16, #tpu.memory_space<vmem>>, vector<64x64xbf16>
    %cst_23 = arith.constant dense<0.000000e+00> : vector<8x64xf32>
    %85 = tpu.matmul %83, %84, %cst_23 {dimension_numbers = #tpu.dot_dimension_numbers<[1], [0], [0], [1], [0, 0, 1, 1], [], []>} : vector<8x64xbf16>, vector<64x64xbf16>, vector<8x64xf32> -> vector<8x64xf32>
    %86 = arith.addf %0, %85 : vector<8x64xf32>
    %c0_24 = arith.constant 0 : index
    %c0_25 = arith.constant 0 : index
    %87 = vector.load %arg6[%c0_24, %c0_25] : memref<1x64xf32, #tpu.memory_space<vmem>>, vector<1x64xf32>
    %88 = arith.mulf %86, %86 : vector<8x64xf32>
    %cst_26 = arith.constant dense<0.000000e+00> : vector<8xf32>
    %89 = vector.multi_reduction <add>, %88, %cst_26 [1] : vector<8x64xf32> to vector<8xf32>
    %90 = vector.shape_cast %89 : vector<8xf32> to vector<8x1xf32>
    %cst_27 = arith.constant 6.400000e+01 : f32
    %91 = vector.broadcast %cst_27 : f32 to vector<8x1xf32>
    %92 = arith.divf %90, %91 : vector<8x1xf32>
    %cst_28 = arith.constant 9.99999997E-7 : f32
    %93 = vector.broadcast %cst_28 : f32 to vector<8x1xf32>
    %94 = arith.addf %92, %93 : vector<8x1xf32>
    %95 = math.rsqrt %94 : vector<8x1xf32>
    %96 = vector.broadcast %95 : vector<8x1xf32> to vector<8x64xf32>
    %97 = arith.mulf %86, %96 : vector<8x64xf32>
    %98 = vector.broadcast %87 : vector<1x64xf32> to vector<8x64xf32>
    %99 = arith.mulf %97, %98 : vector<8x64xf32>
    %100 = arith.truncf %99 : vector<8x64xf32> to vector<8x64xbf16>
    %c0_29 = arith.constant 0 : index
    %c0_30 = arith.constant 0 : index
    %101 = vector.load %arg10[%c0_29, %c0_30] : memref<64x256xbf16, #tpu.memory_space<vmem>>, vector<64x256xbf16>
    %cst_31 = arith.constant dense<0.000000e+00> : vector<8x256xf32>
    %102 = tpu.matmul %100, %101, %cst_31 {dimension_numbers = #tpu.dot_dimension_numbers<[1], [0], [0], [1], [0, 0, 1, 1], [], []>} : vector<8x64xbf16>, vector<64x256xbf16>, vector<8x256xf32> -> vector<8x256xf32>
    %103 = vector.extract_strided_slice %102 {offsets = [0, 0], sizes = [8, 128], strides = [1, 1]} : vector<8x256xf32> to vector<8x128xf32>
    %104 = vector.extract_strided_slice %102 {offsets = [0, 128], sizes = [8, 128], strides = [1, 1]} : vector<8x256xf32> to vector<8x128xf32>
    %105 = arith.negf %103 : vector<8x128xf32>
    %106 = math.exp %105 : vector<8x128xf32>
    %cst_32 = arith.constant 1.000000e+00 : f32
    %107 = vector.broadcast %cst_32 : f32 to vector<8x128xf32>
    %108 = arith.addf %107, %106 : vector<8x128xf32>
    %109 = arith.divf %107, %108 : vector<8x128xf32>
    %110 = arith.mulf %103, %109 : vector<8x128xf32>
    %111 = arith.mulf %110, %104 : vector<8x128xf32>
    %112 = arith.truncf %111 : vector<8x128xf32> to vector<8x128xbf16>
    %c0_33 = arith.constant 0 : index
    %c0_34 = arith.constant 0 : index
    %113 = vector.load %arg11[%c0_33, %c0_34] : memref<128x64xbf16, #tpu.memory_space<vmem>>, vector<128x64xbf16>
    %cst_35 = arith.constant dense<0.000000e+00> : vector<8x64xf32>
    %114 = tpu.matmul %112, %113, %cst_35 {dimension_numbers = #tpu.dot_dimension_numbers<[1], [0], [0], [1], [0, 0, 1, 1], [], []>} : vector<8x128xbf16>, vector<128x64xbf16>, vector<8x64xf32> -> vector<8x64xf32>
    %115 = arith.addf %86, %114 : vector<8x64xf32>
    %116 = vector.extract_strided_slice %26 {offsets = [0, 64], sizes = [8, 64], strides = [1, 1]} : vector<8x128xf32> to vector<8x64xf32>
    %117 = tpu.concatenate %115, %116 in 1 : vector<8x64xf32>, vector<8x64xf32> -> vector<8x128xf32>
    %c0_36 = arith.constant 0 : index
    %c0_37 = arith.constant 0 : index
    %118 = vector.load %arg12[%c0_36, %c0_37] : memref<8x128xf32, #tpu.memory_space<vmem>>, vector<8x128xf32>
    tpu.vector_store %arg12[%c0_36, %c0_37], %117 {strides = array<i32>} : memref<8x128xf32, #tpu.memory_space<vmem>>, vector<8x128xf32>,
    return
  }
  func.func @transform_0(%arg0: i32) -> (i32, i32) {
    %c0_i32 = arith.constant 0 : i32
    %c0_i32_0 = arith.constant 0 : i32
    %c0_i32_1 = arith.constant 0 : i32
    return %c0_i32, %c0_i32_0 : i32, i32
  }
  func.func @transform_1(%arg0: i32) -> (i32, i32) {
    %c0_i32 = arith.constant 0 : i32
    %c0_i32_0 = arith.constant 0 : i32
    %c0_i32_1 = arith.constant 0 : i32
    return %c0_i32, %c0_i32_0 : i32, i32
  }
  func.func @transform_2(%arg0: i32) -> (i32, i32) {
    %c0_i32 = arith.constant 0 : i32
    %c0_i32_0 = arith.constant 0 : i32
    %c0_i32_1 = arith.constant 0 : i32
    return %c0_i32, %c0_i32_0 : i32, i32
  }
  func.func @transform_3(%arg0: i32) -> (i32, i32) {
    %c0_i32 = arith.constant 0 : i32
    %c0_i32_0 = arith.constant 0 : i32
    %c0_i32_1 = arith.constant 0 : i32
    return %c0_i32, %c0_i32_0 : i32, i32
  }
  func.func @transform_4(%arg0: i32) -> (i32, i32) {
    %c0_i32 = arith.constant 0 : i32
    %c0_i32_0 = arith.constant 0 : i32
    %c0_i32_1 = arith.constant 0 : i32
    return %c0_i32, %c0_i32_0 : i32, i32
  }
  func.func @transform_5(%arg0: i32) -> (i32, i32) {
    %c0_i32 = arith.constant 0 : i32
    %c0_i32_0 = arith.constant 0 : i32
    %c0_i32_1 = arith.constant 0 : i32
    return %c0_i32, %c0_i32_0 : i32, i32
  }
  func.func @transform_6(%arg0: i32) -> (i32, i32) {
    %c0_i32 = arith.constant 0 : i32
    %c0_i32_0 = arith.constant 0 : i32
    %c0_i32_1 = arith.constant 0 : i32
    return %c0_i32, %c0_i32_0 : i32, i32
  }
  func.func @transform_7(%arg0: i32) -> (i32, i32) {
    %c0_i32 = arith.constant 0 : i32
    %c0_i32_0 = arith.constant 0 : i32
    %c0_i32_1 = arith.constant 0 : i32
    return %c0_i32, %c0_i32_0 : i32, i32
  }
  func.func @transform_8(%arg0: i32) -> (i32, i32) {
    %c0_i32 = arith.constant 0 : i32
    %c0_i32_0 = arith.constant 0 : i32
    %c0_i32_1 = arith.constant 0 : i32
    return %c0_i32, %c0_i32_0 : i32, i32
  }
  func.func @transform_9(%arg0: i32) -> (i32, i32) {
    %c0_i32 = arith.constant 0 : i32
    %c0_i32_0 = arith.constant 0 : i32
    %c0_i32_1 = arith.constant 0 : i32
    return %c0_i32, %c0_i32_0 : i32, i32
  }
  func.func @transform_10(%arg0: i32) -> (i32, i32) {
    %c0_i32 = arith.constant 0 : i32
    %c0_i32_0 = arith.constant 0 : i32
    %c0_i32_1 = arith.constant 0 : i32
    return %c0_i32, %c0_i32_0 : i32, i32
  }
  func.func @transform_11(%arg0: i32) -> (i32, i32) {
    %c0_i32 = arith.constant 0 : i32
    %c0_i32_0 = arith.constant 0 : i32
    %c0_i32_1 = arith.constant 0 : i32
    return %c0_i32, %c0_i32_0 : i32, i32
  }
}

</mosaic_0001>

<llo_original>
// kernel: tpu_custom_call.1
$region0: #{tpu_custom_call.1}
  #allocation0 [shape = 'u32[]', space=smem, size = 0x4, offset = 0x4, fixed_abs, tag = 'smem constant byte address 0x4 - core index']
  #allocation1 [shape = 'u32[144,128]{1,0:T(1,128)}', space=vmem, size = 0x12000, scoped, tag = 'internal scratch']
  %s0 = inlined_call_operand.hbm [shape: f32[8,64], index: 0, kind: input, shape index: {}]
  %s1 = inlined_call_operand.hbm [shape: f32[8,8], index: 1, kind: input, shape index: {}]
  %s2 = inlined_call_operand.hbm [shape: f32[8,128], index: 2, kind: input, shape index: {}]
  %s3 = inlined_call_operand.hbm [shape: f32[8,128], index: 3, kind: input, shape index: {}]
  %s4 = inlined_call_operand.hbm [shape: f32[1,64], index: 4, kind: input, shape index: {}]
  %s5 = inlined_call_operand.hbm [shape: f32[1,64], index: 5, kind: input, shape index: {}]
  %s6 = inlined_call_operand.vmem [shape: bf16[64,256], index: 6, kind: input, shape index: {}]
  %s7 = inlined_call_operand.vmem [shape: f32[1,256], index: 7, kind: input, shape index: {}]
  %s8 = inlined_call_operand.hbm [shape: bf16[64,64], index: 8, kind: input, shape index: {}]
  %s9 = inlined_call_operand.vmem [shape: bf16[64,256], index: 9, kind: input, shape index: {}]
  %s10 = inlined_call_operand.vmem [shape: bf16[128,64], index: 10, kind: input, shape index: {}]
  %s11 = inlined_call_operand.hbm [shape: f32[8,128], index: 11, kind: output, shape index: {}]
  %s12 = sld [smem:[#allocation0]]
  $region82: #{tpu_custom_call.1} parent=0
    _
  %s14 = ssub.s32 1, %s12
  %s15 = scalar_select 0, %s14, %s12
  $region1: #{tpu_custom_call.1} parent=0
    #allocation2 [shape = 'u8[4096]{0}', space=vmem, size = 0x1000, scoped, tag = 'input window, operand 0, single buffered']
    #allocation3 [shape = 's32[1]{0}', space=sflag, size = 0x4, scoped, tag = 'scoped memory for tpu_custom_call.1']
    #allocation4 [shape = 's32[1]{0}', space=sflag, size = 0x4, scoped, tag = 'scoped memory for tpu_custom_call.1']
    #allocation5 [shape = 'u8[4096]{0}', space=vmem, size = 0x1000, scoped, tag = 'input window, operand 1, single buffered']
    #allocation6 [shape = 's32[1]{0}', space=sflag, size = 0x4, scoped, tag = 'scoped memory for tpu_custom_call.1']
    #allocation7 [shape = 'u8[4096]{0}', space=vmem, size = 0x1000, scoped, tag = 'input window, operand 2, single buffered']
    #allocation8 [shape = 'u8[4096]{0}', space=vmem, size = 0x1000, scoped, tag = 'input window, operand 3, single buffered']
    #allocation9 [shape = 's32[1]{0}', space=sflag, size = 0x4, scoped, tag = 'scoped memory for tpu_custom_call.1']
    #allocation10 [shape = 'u8[512]{0}', space=vmem, size = 0x400, scoped, tag = 'input window, operand 4, single buffered']
    #allocation11 [shape = 'u8[512]{0}', space=vmem, size = 0x400, scoped, tag = 'input window, operand 5, single buffered']
    #allocation12 [shape = 's32[1]{0}', space=sflag, size = 0x4, scoped, tag = 'scoped memory for tpu_custom_call.1']
    #allocation13 [shape = 'u8[16384]{0}', space=vmem, size = 0x4000, scoped, tag = 'input window, operand 8, single buffered']
    #allocation14 [shape = 'u8[4096]{0}', space=vmem, size = 0x1000, scoped, tag = 'output window, operand 0, single buffered']
    %16 = vsyncpa [#allocation3], 0
    %17 = vsyncpa [#allocation6], 0
    %18 = vsyncpa [#allocation9], 0
    %19 = vsyncpa [#allocation12], 0
    %20 = vsyncpa [#allocation4], 0
    // Predicated region
    $region2: #{tpu_custom_call.1} parent=1 // pred_check
      _
    $region3: #{tpu_custom_call.1} parent=1 // pred_check_branch
      %22 = sbr.rel (0) target = $region5
    $region4: #{tpu_custom_call.1} parent=1 // pred_region
      %s24 = ssub.s32 128, 128
      %25 = vsyncadd [#allocation3], %s24
      %s27 = sshll.u32 [#allocation2], 4
      %s28 = int_to_ptr.vmem [resolvable:$true] %s27
      %30 = dma.hbm_to_vmem [thread:$0]  %s0, 128, %s28, [#allocation3]
    $region5: #{tpu_custom_call.1} parent=1 // pred_fallthru
      _
    // Predicated region
    $region6: #{tpu_custom_call.1} parent=1 // pred_check
      _
    $region7: #{tpu_custom_call.1} parent=1 // pred_check_branch
      %32 = sbr.rel (0) target = $region9
    $region8: #{tpu_custom_call.1} parent=1 // pred_region
      %s34 = ssub.s32 128, 128
      %35 = vsyncadd [#allocation6], %s34
      %s37 = sshll.u32 [#allocation5], 4
      %s38 = int_to_ptr.vmem [resolvable:$true] %s37
      %40 = dma.hbm_to_vmem [thread:$0]  %s1, 128, %s38, [#allocation6]
    $region9: #{tpu_custom_call.1} parent=1 // pred_fallthru
      _
    // Predicated region
    $region10: #{tpu_custom_call.1} parent=1 // pred_check
      _
    $region11: #{tpu_custom_call.1} parent=1 // pred_check_branch
      %42 = sbr.rel (0) target = $region13
    $region12: #{tpu_custom_call.1} parent=1 // pred_region
      %s44 = ssub.s32 128, 128
      %45 = vsyncadd [#allocation6], %s44
      %s47 = sshll.u32 [#allocation7], 4
      %s48 = int_to_ptr.vmem [resolvable:$true] %s47
      %50 = dma.hbm_to_vmem [thread:$0]  %s2, 128, %s48, [#allocation6]
    $region13: #{tpu_custom_call.1} parent=1 // pred_fallthru
      _
    // Predicated region
    $region14: #{tpu_custom_call.1} parent=1 // pred_check
      _
    $region15: #{tpu_custom_call.1} parent=1 // pred_check_branch
      %52 = sbr.rel (0) target = $region17
    $region16: #{tpu_custom_call.1} parent=1 // pred_region
      %s54 = ssub.s32 128, 128
      %55 = vsyncadd [#allocation9], %s54
      %s57 = sshll.u32 [#allocation8], 4
      %s58 = int_to_ptr.vmem [resolvable:$true] %s57
      %60 = dma.hbm_to_vmem [thread:$0]  %s3, 128, %s58, [#allocation9]
    $region17: #{tpu_custom_call.1} parent=1 // pred_fallthru
      _
    // Predicated region
    $region18: #{tpu_custom_call.1} parent=1 // pred_check
      _
    $region19: #{tpu_custom_call.1} parent=1 // pred_check_branch
      %62 = sbr.rel (0) target = $region21
    $region20: #{tpu_custom_call.1} parent=1 // pred_region
      %s64 = ssub.s32 16, 16
      %65 = vsyncadd [#allocation9], %s64
      %s67 = sshll.u32 [#allocation10], 4
      %s68 = int_to_ptr.vmem [resolvable:$true] %s67
      %70 = dma.hbm_to_vmem [thread:$0]  %s4, 16, %s68, [#allocation9]
    $region21: #{tpu_custom_call.1} parent=1 // pred_fallthru
      _
    // Predicated region
    $region22: #{tpu_custom_call.1} parent=1 // pred_check
      _
    $region23: #{tpu_custom_call.1} parent=1 // pred_check_branch
      %72 = sbr.rel (0) target = $region25
    $region24: #{tpu_custom_call.1} parent=1 // pred_region
      %s74 = ssub.s32 16, 16
      %75 = vsyncadd [#allocation12], %s74
      %s77 = sshll.u32 [#allocation11], 4
      %s78 = int_to_ptr.vmem [resolvable:$true] %s77
      %80 = dma.hbm_to_vmem [thread:$0]  %s5, 16, %s78, [#allocation12]
    $region25: #{tpu_custom_call.1} parent=1 // pred_fallthru
      _
    // Predicated region
    $region26: #{tpu_custom_call.1} parent=1 // pred_check
      _
    $region27: #{tpu_custom_call.1} parent=1 // pred_check_branch
      %82 = sbr.rel (0) target = $region29
    $region28: #{tpu_custom_call.1} parent=1 // pred_region
      _
    $region29: #{tpu_custom_call.1} parent=1 // pred_fallthru
      _
    // Predicated region
    $region30: #{tpu_custom_call.1} parent=1 // pred_check
      _
    $region31: #{tpu_custom_call.1} parent=1 // pred_check_branch
      %84 = sbr.rel (0) target = $region33
    $region32: #{tpu_custom_call.1} parent=1 // pred_region
      _
    $region33: #{tpu_custom_call.1} parent=1 // pred_fallthru
      _
    // Predicated region
    $region34: #{tpu_custom_call.1} parent=1 // pred_check
      _
    $region35: #{tpu_custom_call.1} parent=1 // pred_check_branch
      %86 = sbr.rel (0) target = $region37
    $region36: #{tpu_custom_call.1} parent=1 // pred_region
      %s88 = ssub.s32 512, 512
      %89 = vsyncadd [#allocation12], %s88
      %s90 = sshll.u32 [#allocation13], 4
      %s91 = int_to_ptr.vmem [resolvable:$true] %s90
      %96 = dma.hbm_to_vmem [thread:$0]  %s8, 512, %s91, [#allocation12], 64, 64, 4
    $region37: #{tpu_custom_call.1} parent=1 // pred_fallthru
      _
    // Predicated region
    $region38: #{tpu_custom_call.1} parent=1 // pred_check
      _
    $region39: #{tpu_custom_call.1} parent=1 // pred_check_branch
      %98 = sbr.rel (0) target = $region41
    $region40: #{tpu_custom_call.1} parent=1 // pred_region
      _
    $region41: #{tpu_custom_call.1} parent=1 // pred_fallthru
      _
    // Predicated region
    $region42: #{tpu_custom_call.1} parent=1 // pred_check
      _
    $region43: #{tpu_custom_call.1} parent=1 // pred_check_branch
      %100 = sbr.rel (0) target = $region45
    $region44: #{tpu_custom_call.1} parent=1 // pred_region
      _
    $region45: #{tpu_custom_call.1} parent=1 // pred_fallthru
      _
    // Predicated region
    $region46: #{tpu_custom_call.1} parent=1 // pred_check
      _
    $region47: #{tpu_custom_call.1} parent=1 // pred_check_branch
      %102 = sbr.rel (0) target = $region49
    $region48: #{tpu_custom_call.1} parent=1 // pred_region
      %103 = dma.done [#allocation3], 128
    $region49: #{tpu_custom_call.1} parent=1 // pred_fallthru
      _
    // Predicated region
    $region50: #{tpu_custom_call.1} parent=1 // pred_check
      _
    $region51: #{tpu_custom_call.1} parent=1 // pred_check_branch
      %105 = sbr.rel (0) target = $region53
    $region52: #{tpu_custom_call.1} parent=1 // pred_region
      %106 = dma.done [#allocation6], 128
    $region53: #{tpu_custom_call.1} parent=1 // pred_fallthru
      _
    // Predicated region
    $region54: #{tpu_custom_call.1} parent=1 // pred_check
      _
    $region55: #{tpu_custom_call.1} parent=1 // pred_check_branch
      %108 = sbr.rel (0) target = $region57
    $region56: #{tpu_custom_call.1} parent=1 // pred_region
      %109 = dma.done [#allocation6], 128
    $region57: #{tpu_custom_call.1} parent=1 // pred_fallthru
      _
    // Predicated region
    $region58: #{tpu_custom_call.1} parent=1 // pred_check
      _
    $region59: #{tpu_custom_call.1} parent=1 // pred_check_branch
      %111 = sbr.rel (0) target = $region61
    $region60: #{tpu_custom_call.1} parent=1 // pred_region
      %112 = dma.done [#allocation9], 128
    $region61: #{tpu_custom_call.1} parent=1 // pred_fallthru
      _
    // Predicated region
    $region62: #{tpu_custom_call.1} parent=1 // pred_check
      _
    $region63: #{tpu_custom_call.1} parent=1 // pred_check_branch
      %114 = sbr.rel (0) target = $region65
    $region64: #{tpu_custom_call.1} parent=1 // pred_region
      %115 = dma.done [#allocation9], 16
    $region65: #{tpu_custom_call.1} parent=1 // pred_fallthru
      _
    // Predicated region
    $region66: #{tpu_custom_call.1} parent=1 // pred_check
      _
    $region67: #{tpu_custom_call.1} parent=1 // pred_check_branch
      %117 = sbr.rel (0) target = $region69
    $region68: #{tpu_custom_call.1} parent=1 // pred_region
      %118 = dma.done [#allocation12], 16
    $region69: #{tpu_custom_call.1} parent=1 // pred_fallthru
      _
    // Predicated region
    $region70: #{tpu_custom_call.1} parent=1 // pred_check
      _
    $region71: #{tpu_custom_call.1} parent=1 // pred_check_branch
      %120 = sbr.rel (0) target = $region73
    $region72: #{tpu_custom_call.1} parent=1 // pred_region
      %121 = dma.done [#allocation12], 512
    $region73: #{tpu_custom_call.1} parent=1 // pred_fallthru
      _
    %v123 = vld [vmem:[#allocation2] sm:$0xff]
    %v124 = vld [vmem:[#allocation10] sm:$0x1]
    %v125 = vmul.f32 %v123, %v123
    %vm126 = vcmask 523264
    %v127 = vsel %vm126, %v125, 0.0
    %128 = vadd.xlane.f32.xlu0 %v127
    %v129 = vpop.xlane.xlu0 %128
    %v130 = vrcp.pop 64.0
    %v131 = vmul.f32 %v129, %v130
    %v132 = vadd.f32 %v131, 1e-06
    %v133 = vrsqrt.pop %v132
    %v134 = vmul.f32 %v123, %v133
    %v136 = vlaneseq
    %v137 = vshrl.u32 %v136, 7
    %v138 = vsub.s32 0, %v137
    %v139 = vrot.slane %v124, %v138
    %v141 = vmul.f32 %v134, %v139
    %v142 = vpack.c.bf16 %v141, %v141
    %v143 = vld [vmem:[%s6] sm:$0xff]
    %v144 = vld [vmem:[%s6 + $0x8] sm:$0xff]
    %v145 = vld [vmem:[%s6 + $0x10] sm:$0xff]
    %v146 = vld [vmem:[%s6 + $0x18] sm:$0xff]
    %v147 = vld [vmem:[%s6 + $0x20] sm:$0xff]
    %v148 = vld [vmem:[%s6 + $0x28] sm:$0xff]
    %v149 = vld [vmem:[%s6 + $0x30] sm:$0xff]
    %v150 = vld [vmem:[%s6 + $0x38] sm:$0xff]
    %v151 = vld [vmem:[%s7] sm:$0x3]
    %v153 = vlaneseq
    %v154 = vshrl.u32 %v153, 7
    %v155 = vsub.s32 0, %v154
    %v156 = vrot.slane %v151, %v155
    %v157 = vlaneseq
    %v158 = vshrl.u32 %v157, 7
    %v159 = vsub.s32 1, %v158
    %v160 = vrot.slane %v151, %v159
    %v171 = vunpack.c.l.b16 %v143
    %v172 = vunpack.c.h.b16 %v143
    %v173 = vunpack.c.l.b16 %v144
    %v174 = vunpack.c.h.b16 %v144
    %v175 = vunpack.c.l.b16 %v145
    %v176 = vunpack.c.h.b16 %v145
    %v177 = vunpack.c.l.b16 %v146
    %v178 = vunpack.c.h.b16 %v146
    %v179 = vunpack.c.l.b16 %v147
    %v180 = vunpack.c.h.b16 %v147
    %v181 = vunpack.c.l.b16 %v148
    %v182 = vunpack.c.h.b16 %v148
    %v183 = vunpack.c.l.b16 %v149
    %v184 = vunpack.c.h.b16 %v149
    %v185 = vunpack.c.l.b16 %v150
    %v186 = vunpack.c.h.b16 %v150
    %v187 = vpack.c.b16 %v173, %v171
    %v188 = vpack.c.b16 %v174, %v172
    %v189 = vpack.c.b16 %v177, %v175
    %v190 = vpack.c.b16 %v178, %v176
    %v191 = vpack.c.b16 %v181, %v179
    %v192 = vpack.c.b16 %v182, %v180
    %v193 = vpack.c.b16 %v185, %v183
    %v194 = vpack.c.b16 %v186, %v184
    %v204 = vsel %vm126, %v142, 0
    %206 = vmatprep.subr.bf16.mxu0 %v188
    %207 = vmatpush1.bf16.msra.mxu0 %v187
    %208 = vmatprep.subr.bf16.mxu0 %v190
    %209 = vmatpush1.bf16.msra.mxu0 %v189
    %210 = vmatprep.subr.bf16.mxu0 %v192
    %211 = vmatpush1.bf16.msra.mxu0 %v191
    %212 = vmatprep.subr.bf16.mxu0 %v194
    %213 = vmatpush1.bf16.msra.mxu0 %v193
    %214 = vmatprep.subr.bf16.mxu0 0
    %215 = vmatpush1.bf16.msra.mxu0 0
    %216 = vmatprep.subr.bf16.mxu0 0
    %217 = vmatpush1.bf16.msra.mxu0 0
    %218 = vmatprep.subr.bf16.mxu0 0
    %219 = vmatpush1.bf16.msra.mxu0 0
    %220 = vmatprep.subr.bf16.mxu0 0
    %221 = vmatpush1.bf16.msra.mxu0 0
    %222 = vmatprep.subr.bf16.mxu0 0
    %223 = vmatpush1.bf16.msra.mxu0 0
    %224 = vmatprep.subr.bf16.mxu0 0
    %225 = vmatpush1.bf16.msra.mxu0 0
    %226 = vmatprep.subr.bf16.mxu0 0
    %227 = vmatpush1.bf16.msra.mxu0 0
    %228 = vmatprep.subr.bf16.mxu0 0
    %229 = vmatpush1.bf16.msra.mxu0 0
    %230 = vmatprep.subr.bf16.mxu0 0
    %231 = vmatpush1.bf16.msra.mxu0 0
    %232 = vmatprep.subr.bf16.mxu0 0
    %233 = vmatpush1.bf16.msra.mxu0 0
    %234 = vmatprep.subr.bf16.mxu0 0
    %235 = vmatpush1.bf16.msra.mxu0 0
    %236 = vmatprep.subr.bf16.mxu0 0
    %237 = vmatpush1.bf16.msra.mxu0 0
    %238 = vmatprep.mubr.bf16.mxu0 0
    %239 = vmatmul.mubr.bf16.gmra.mrb[0].mxu0 %v204
    %v240 = vpop.f32.mrb[0].mxu0
    %v241 = vadd.f32 %v156, %v240
    %v242 = vpop.f32.mrb[0].mxu0
    %v243 = vadd.f32 %v160, %v242
    %v244 = vpop.f32.mrb[0].mxu0
    %v245 = vpop.f32.mrb[0].mxu0
    %246 = vdwg.mxu0
    %v247 = vld [vmem:[#allocation7] sm:$0xff]
    %v248 = vmul.f32 %v241, %v247
    %v249 = vld [vmem:[#allocation8] sm:$0xff]
    %v250 = vmul.f32 %v243, %v249
    %v251 = vadd.f32 %v248, %v250
    %v252 = vld [vmem:[#allocation5] sm:$0xff]
    %v253 = vpack.c.bf16 %v251, %v251
    %255 = vrot.lane.b32.xlu0 %v253, 112
    %v256 = vpop.permute.xlu0 %255
    %257 = vrot.lane.b32.xlu0 %v253, 96
    %v258 = vpop.permute.xlu0 %257
    %259 = vrot.lane.b32.xlu0 %v253, 80
    %v260 = vpop.permute.xlu0 %259
    %261 = vrot.lane.b32.xlu0 %v253, 64
    %v262 = vpop.permute.xlu0 %261
    %vm263 = vcmask 130048
    %v265 = vsel %vm263, %v253, 0
    %v268 = vsel %vm263, %v262, 0
    %270 = vmatprep.subr.bf16.mxu0 0
    %271 = vmatpush1.bf16.xpose.msra.mxu0 %v268
    %272 = vmatprep.subr.bf16.mxu0 0
    %273 = vmatpush1.bf16.xpose.msra.mxu0 0
    %274 = vmatprep.subr.bf16.mxu0 0
    %275 = vmatpush1.bf16.xpose.msra.mxu0 0
    %276 = vmatprep.subr.bf16.mxu0 0
    %277 = vmatpush1.bf16.xpose.msra.mxu0 0
    %278 = vmatprep.subr.bf16.mxu0 0
    %279 = vmatpush1.bf16.xpose.msra.mxu0 0
    %280 = vmatprep.subr.bf16.mxu0 0
    %281 = vmatpush1.bf16.xpose.msra.mxu0 0
    %282 = vmatprep.subr.bf16.mxu0 0
    %283 = vmatpush1.bf16.xpose.msra.mxu0 0
    %284 = vmatprep.subr.bf16.mxu0 0
    %285 = vmatpush1.bf16.xpose.msra.mxu0 0
    %286 = vmatprep.subr.bf16.mxu0 0
    %287 = vmatpush1.bf16.xpose.msra.mxu0 0
    %288 = vmatprep.subr.bf16.mxu0 0
    %289 = vmatpush1.bf16.xpose.msra.mxu0 0
    %290 = vmatprep.subr.bf16.mxu0 0
    %291 = vmatpush1.bf16.xpose.msra.mxu0 0
    %292 = vmatprep.subr.bf16.mxu0 0
    %293 = vmatpush1.bf16.xpose.msra.mxu0 0
    %294 = vmatprep.subr.bf16.mxu0 0
    %295 = vmatpush1.bf16.xpose.msra.mxu0 0
    %296 = vmatprep.subr.bf16.mxu0 0
    %297 = vmatpush1.bf16.xpose.msra.mxu0 0
    %298 = vmatprep.subr.bf16.mxu0 0
    %299 = vmatpush1.bf16.xpose.msra.mxu0 0
    %300 = vmatprep.subr.bf16.mxu0 0
    %301 = vmatpush1.bf16.xpose.msra.mxu0 0
    %302 = vmatprep.mubr.bf16.mxu0 0
    %303 = vmatmul.mubr.bf16.gmra.mrb[0].mxu0 %v265
    %v304 = vpop.f32.mrb[0].mxu0
    %v305 = vadd.f32 0.0, %v304
    %v306 = vpop.f32.mrb[0].mxu0
    %v307 = vpop.f32.mrb[0].mxu0
    %v308 = vpop.f32.mrb[0].mxu0
    %309 = vdwg.mxu0
    %v311 = vsel %vm263, %v256, 0
    %313 = vmatprep.subr.bf16.mxu0 0
    %314 = vmatpush1.bf16.xpose.msra.mxu0 %v268
    %315 = vmatprep.subr.bf16.mxu0 0
    %316 = vmatpush1.bf16.xpose.msra.mxu0 0
    %317 = vmatprep.subr.bf16.mxu0 0
    %318 = vmatpush1.bf16.xpose.msra.mxu0 0
    %319 = vmatprep.subr.bf16.mxu0 0
    %320 = vmatpush1.bf16.xpose.msra.mxu0 0
    %321 = vmatprep.subr.bf16.mxu0 0
    %322 = vmatpush1.bf16.xpose.msra.mxu0 0
    %323 = vmatprep.subr.bf16.mxu0 0
    %324 = vmatpush1.bf16.xpose.msra.mxu0 0
    %325 = vmatprep.subr.bf16.mxu0 0
    %326 = vmatpush1.bf16.xpose.msra.mxu0 0
    %327 = vmatprep.subr.bf16.mxu0 0
    %328 = vmatpush1.bf16.xpose.msra.mxu0 0
    %329 = vmatprep.subr.bf16.mxu0 0
    %330 = vmatpush1.bf16.xpose.msra.mxu0 0
    %331 = vmatprep.subr.bf16.mxu0 0
    %332 = vmatpush1.bf16.xpose.msra.mxu0 0
    %333 = vmatprep.subr.bf16.mxu0 0
    %334 = vmatpush1.bf16.xpose.msra.mxu0 0
    %335 = vmatprep.subr.bf16.mxu0 0
    %336 = vmatpush1.bf16.xpose.msra.mxu0 0
    %337 = vmatprep.subr.bf16.mxu0 0
    %338 = vmatpush1.bf16.xpose.msra.mxu0 0
    %339 = vmatprep.subr.bf16.mxu0 0
    %340 = vmatpush1.bf16.xpose.msra.mxu0 0
    %341 = vmatprep.subr.bf16.mxu0 0
    %342 = vmatpush1.bf16.xpose.msra.mxu0 0
    %343 = vmatprep.subr.bf16.mxu0 0
    %344 = vmatpush1.bf16.xpose.msra.mxu0 0
    %345 = vmatprep.mubr.bf16.mxu0 0
    %346 = vmatmul.mubr.bf16.gmra.mrb[0].mxu0 %v311
    %v347 = vpop.f32.mrb[0].mxu0
    %v348 = vadd.f32 0.0, %v347
    %v349 = vpop.f32.mrb[0].mxu0
    %v350 = vpop.f32.mrb[0].mxu0
    %v351 = vpop.f32.mrb[0].mxu0
    %352 = vdwg.mxu0
    %353 = vrot.lane.b32.xlu0 %v256, 64
    %v354 = vpop.permute.xlu0 %353
    %v356 = vsel %vm263, %v258, 0
    %v359 = vsel %vm263, %v354, 0
    %361 = vmatprep.subr.bf16.mxu0 0
    %362 = vmatpush1.bf16.xpose.msra.mxu0 %v359
    %363 = vmatprep.subr.bf16.mxu0 0
    %364 = vmatpush1.bf16.xpose.msra.mxu0 0
    %365 = vmatprep.subr.bf16.mxu0 0
    %366 = vmatpush1.bf16.xpose.msra.mxu0 0
    %367 = vmatprep.subr.bf16.mxu0 0
    %368 = vmatpush1.bf16.xpose.msra.mxu0 0
    %369 = vmatprep.subr.bf16.mxu0 0
    %370 = vmatpush1.bf16.xpose.msra.mxu0 0
    %371 = vmatprep.subr.bf16.mxu0 0
    %372 = vmatpush1.bf16.xpose.msra.mxu0 0
    %373 = vmatprep.subr.bf16.mxu0 0
    %374 = vmatpush1.bf16.xpose.msra.mxu0 0
    %375 = vmatprep.subr.bf16.mxu0 0
    %376 = vmatpush1.bf16.xpose.msra.mxu0 0
    %377 = vmatprep.subr.bf16.mxu0 0
    %378 = vmatpush1.bf16.xpose.msra.mxu0 0
    %379 = vmatprep.subr.bf16.mxu0 0
    %380 = vmatpush1.bf16.xpose.msra.mxu0 0
    %381 = vmatprep.subr.bf16.mxu0 0
    %382 = vmatpush1.bf16.xpose.msra.mxu0 0
    %383 = vmatprep.subr.bf16.mxu0 0
    %384 = vmatpush1.bf16.xpose.msra.mxu0 0
    %385 = vmatprep.subr.bf16.mxu0 0
    %386 = vmatpush1.bf16.xpose.msra.mxu0 0
    %387 = vmatprep.subr.bf16.mxu0 0
    %388 = vmatpush1.bf16.xpose.msra.mxu0 0
    %389 = vmatprep.subr.bf16.mxu0 0
    %390 = vmatpush1.bf16.xpose.msra.mxu0 0
    %391 = vmatprep.subr.bf16.mxu0 0
    %392 = vmatpush1.bf16.xpose.msra.mxu0 0
    %393 = vmatprep.mubr.bf16.mxu0 0
    %394 = vmatmul.mubr.bf16.gmra.mrb[0].mxu0 %v356
    %v395 = vpop.f32.mrb[0].mxu0
    %v396 = vadd.f32 0.0, %v395
    %v397 = vpop.f32.mrb[0].mxu0
    %v398 = vpop.f32.mrb[0].mxu0
    %v399 = vpop.f32.mrb[0].mxu0
    %400 = vdwg.mxu0
    %v402 = vsel %vm263, %v260, 0
    %404 = vmatprep.subr.bf16.mxu0 0
    %405 = vmatpush1.bf16.xpose.msra.mxu0 %v359
    %406 = vmatprep.subr.bf16.mxu0 0
    %407 = vmatpush1.bf16.xpose.msra.mxu0 0
    %408 = vmatprep.subr.bf16.mxu0 0
    %409 = vmatpush1.bf16.xpose.msra.mxu0 0
    %410 = vmatprep.subr.bf16.mxu0 0
    %411 = vmatpush1.bf16.xpose.msra.mxu0 0
    %412 = vmatprep.subr.bf16.mxu0 0
    %413 = vmatpush1.bf16.xpose.msra.mxu0 0
    %414 = vmatprep.subr.bf16.mxu0 0
    %415 = vmatpush1.bf16.xpose.msra.mxu0 0
    %416 = vmatprep.subr.bf16.mxu0 0
    %417 = vmatpush1.bf16.xpose.msra.mxu0 0
    %418 = vmatprep.subr.bf16.mxu0 0
    %419 = vmatpush1.bf16.xpose.msra.mxu0 0
    %420 = vmatprep.subr.bf16.mxu0 0
    %421 = vmatpush1.bf16.xpose.msra.mxu0 0
    %422 = vmatprep.subr.bf16.mxu0 0
    %423 = vmatpush1.bf16.xpose.msra.mxu0 0
    %424 = vmatprep.subr.bf16.mxu0 0
    %425 = vmatpush1.bf16.xpose.msra.mxu0 0
    %426 = vmatprep.subr.bf16.mxu0 0
    %427 = vmatpush1.bf16.xpose.msra.mxu0 0
    %428 = vmatprep.subr.bf16.mxu0 0
    %429 = vmatpush1.bf16.xpose.msra.mxu0 0
    %430 = vmatprep.subr.bf16.mxu0 0
    %431 = vmatpush1.bf16.xpose.msra.mxu0 0
    %432 = vmatprep.subr.bf16.mxu0 0
    %433 = vmatpush1.bf16.xpose.msra.mxu0 0
    %434 = vmatprep.subr.bf16.mxu0 0
    %435 = vmatpush1.bf16.xpose.msra.mxu0 0
    %436 = vmatprep.mubr.bf16.mxu0 0
    %437 = vmatmul.mubr.bf16.gmra.mrb[0].mxu0 %v402
    %v438 = vpop.f32.mrb[0].mxu0
    %v439 = vadd.f32 0.0, %v438
    %v440 = vpop.f32.mrb[0].mxu0
    %v441 = vpop.f32.mrb[0].mxu0
    %v442 = vpop.f32.mrb[0].mxu0
    %443 = vdwg.mxu0
    %v444 = vmul.f32 %v305, 0.25
    %v445 = vmul.f32 %v348, 0.25
    %v446 = vmul.f32 %v396, 0.25
    %v447 = vmul.f32 %v439, 0.25
    %v448 = vadd.f32 %v444, %v252
    %v449 = vadd.f32 %v445, %v252
    %v450 = vadd.f32 %v446, %v252
    %v451 = vadd.f32 %v447, %v252
    %vm452 = vcmask 64512
    %v453 = vsel %vm452, %v448, -inf
    %454 = vmax.xlane.f32.xlu0 %v453
    %v455 = vpop.xlane.xlu0 %454
    %v456 = vsel %vm452, %v449, -inf
    %457 = vmax.xlane.f32.xlu0 %v456
    %v458 = vpop.xlane.xlu0 %457
    %v459 = vsel %vm452, %v450, -inf
    %460 = vmax.xlane.f32.xlu0 %v459
    %v461 = vpop.xlane.xlu0 %460
    %v462 = vsel %vm452, %v451, -inf
    %463 = vmax.xlane.f32.xlu0 %v462
    %v464 = vpop.xlane.xlu0 %463
    %v465 = vsub.f32 %v448, %v455
    %v466 = vsub.f32 %v449, %v458
    %v467 = vsub.f32 %v450, %v461
    %v468 = vsub.f32 %v451, %v464
    %v469 = vmul.f32 %v465, 1.442695
    %v470 = vpow.pop %v469
    %v471 = vmul.f32 %v466, 1.442695
    %v472 = vpow.pop %v471
    %v473 = vmul.f32 %v467, 1.442695
    %v474 = vpow.pop %v473
    %v475 = vmul.f32 %v468, 1.442695
    %v476 = vpow.pop %v475
    %v477 = vsel %vm452, %v470, 0.0
    %478 = vadd.xlane.f32.xlu0 %v477
    %v479 = vpop.xlane.xlu0 %478
    %v480 = vsel %vm452, %v472, 0.0
    %481 = vadd.xlane.f32.xlu0 %v480
    %v482 = vpop.xlane.xlu0 %481
    %v483 = vsel %vm452, %v474, 0.0
    %484 = vadd.xlane.f32.xlu0 %v483
    %v485 = vpop.xlane.xlu0 %484
    %v486 = vsel %vm452, %v476, 0.0
    %487 = vadd.xlane.f32.xlu0 %v486
    %v488 = vpop.xlane.xlu0 %487
    %v489 = vrcp.pop %v479
    %v490 = vrcp.pop %v482
    %v491 = vrcp.pop %v485
    %v492 = vrcp.pop %v488
    %v493 = vmul.f32 %v470, %v489
    %v494 = vmul.f32 %v472, %v490
    %v495 = vmul.f32 %v474, %v491
    %v496 = vmul.f32 %v476, %v492
    %v497 = vpack.c.bf16 %v493, %v493
    %v498 = vpack.c.bf16 %v494, %v494
    %v499 = vpack.c.bf16 %v495, %v495
    %v500 = vpack.c.bf16 %v496, %v496
    %501 = vrot.lane.b32.xlu0 %v253, 32
    %v502 = vpop.permute.xlu0 %501
    %v504 = vsel %vm452, %v497, 0
    %vm506 = vcmask 1043456
    %v508 = vsel %vm506, %v502, 0
    %510 = vmatprep.subr.bf16.mxu0 0
    %511 = vmatpush1.bf16.msra.mxu0 %v508
    %512 = vmatprep.subr.bf16.mxu0 0
    %513 = vmatpush1.bf16.msra.mxu0 0
    %514 = vmatprep.subr.bf16.mxu0 0
    %515 = vmatpush1.bf16.msra.mxu0 0
    %516 = vmatprep.subr.bf16.mxu0 0
    %517 = vmatpush1.bf16.msra.mxu0 0
    %518 = vmatprep.subr.bf16.mxu0 0
    %519 = vmatpush1.bf16.msra.mxu0 0
    %520 = vmatprep.subr.bf16.mxu0 0
    %521 = vmatpush1.bf16.msra.mxu0 0
    %522 = vmatprep.subr.bf16.mxu0 0
    %523 = vmatpush1.bf16.msra.mxu0 0
    %524 = vmatprep.subr.bf16.mxu0 0
    %525 = vmatpush1.bf16.msra.mxu0 0
    %526 = vmatprep.subr.bf16.mxu0 0
    %527 = vmatpush1.bf16.msra.mxu0 0
    %528 = vmatprep.subr.bf16.mxu0 0
    %529 = vmatpush1.bf16.msra.mxu0 0
    %530 = vmatprep.subr.bf16.mxu0 0
    %531 = vmatpush1.bf16.msra.mxu0 0
    %532 = vmatprep.subr.bf16.mxu0 0
    %533 = vmatpush1.bf16.msra.mxu0 0
    %534 = vmatprep.subr.bf16.mxu0 0
    %535 = vmatpush1.bf16.msra.mxu0 0
    %536 = vmatprep.subr.bf16.mxu0 0
    %537 = vmatpush1.bf16.msra.mxu0 0
    %538 = vmatprep.subr.bf16.mxu0 0
    %539 = vmatpush1.bf16.msra.mxu0 0
    %540 = vmatprep.subr.bf16.mxu0 0
    %541 = vmatpush1.bf16.msra.mxu0 0
    %542 = vmatprep.mubr.bf16.mxu0 0
    %543 = vmatmul.mubr.bf16.gmra.mrb[0].mxu0 %v504
    %v544 = vpop.f32.mrb[0].mxu0
    %v545 = vadd.f32 0.0, %v544
    %v546 = vpop.f32.mrb[0].mxu0
    %v547 = vpop.f32.mrb[0].mxu0
    %v548 = vpop.f32.mrb[0].mxu0
    %549 = vdwg.mxu0
    %v551 = vsel %vm452, %v498, 0
    %553 = vmatprep.subr.bf16.mxu0 0
    %554 = vmatpush1.bf16.msra.mxu0 %v508
    %555 = vmatprep.subr.bf16.mxu0 0
    %556 = vmatpush1.bf16.msra.mxu0 0
    %557 = vmatprep.subr.bf16.mxu0 0
    %558 = vmatpush1.bf16.msra.mxu0 0
    %559 = vmatprep.subr.bf16.mxu0 0
    %560 = vmatpush1.bf16.msra.mxu0 0
    %561 = vmatprep.subr.bf16.mxu0 0
    %562 = vmatpush1.bf16.msra.mxu0 0
    %563 = vmatprep.subr.bf16.mxu0 0
    %564 = vmatpush1.bf16.msra.mxu0 0
    %565 = vmatprep.subr.bf16.mxu0 0
    %566 = vmatpush1.bf16.msra.mxu0 0
    %567 = vmatprep.subr.bf16.mxu0 0
    %568 = vmatpush1.bf16.msra.mxu0 0
    %569 = vmatprep.subr.bf16.mxu0 0
    %570 = vmatpush1.bf16.msra.mxu0 0
    %571 = vmatprep.subr.bf16.mxu0 0
    %572 = vmatpush1.bf16.msra.mxu0 0
    %573 = vmatprep.subr.bf16.mxu0 0
    %574 = vmatpush1.bf16.msra.mxu0 0
    %575 = vmatprep.subr.bf16.mxu0 0
    %576 = vmatpush1.bf16.msra.mxu0 0
    %577 = vmatprep.subr.bf16.mxu0 0
    %578 = vmatpush1.bf16.msra.mxu0 0
    %579 = vmatprep.subr.bf16.mxu0 0
    %580 = vmatpush1.bf16.msra.mxu0 0
    %581 = vmatprep.subr.bf16.mxu0 0
    %582 = vmatpush1.bf16.msra.mxu0 0
    %583 = vmatprep.subr.bf16.mxu0 0
    %584 = vmatpush1.bf16.msra.mxu0 0
    %585 = vmatprep.mubr.bf16.mxu0 0
    %586 = vmatmul.mubr.bf16.gmra.mrb[0].mxu0 %v551
    %v587 = vpop.f32.mrb[0].mxu0
    %v588 = vadd.f32 0.0, %v587
    %v589 = vpop.f32.mrb[0].mxu0
    %v590 = vpop.f32.mrb[0].mxu0
    %v591 = vpop.f32.mrb[0].mxu0
    %592 = vdwg.mxu0
    %593 = vrot.lane.b32.xlu0 %v256, 32
    %v594 = vpop.permute.xlu0 %593
    %v596 = vsel %vm452, %v499, 0
    %v599 = vsel %vm506, %v594, 0
    %601 = vmatprep.subr.bf16.mxu0 0
    %602 = vmatpush1.bf16.msra.mxu0 %v599
    %603 = vmatprep.subr.bf16.mxu0 0
    %604 = vmatpush1.bf16.msra.mxu0 0
    %605 = vmatprep.subr.bf16.mxu0 0
    %606 = vmatpush1.bf16.msra.mxu0 0
    %607 = vmatprep.subr.bf16.mxu0 0
    %608 = vmatpush1.bf16.msra.mxu0 0
    %609 = vmatprep.subr.bf16.mxu0 0
    %610 = vmatpush1.bf16.msra.mxu0 0
    %611 = vmatprep.subr.bf16.mxu0 0
    %612 = vmatpush1.bf16.msra.mxu0 0
    %613 = vmatprep.subr.bf16.mxu0 0
    %614 = vmatpush1.bf16.msra.mxu0 0
    %615 = vmatprep.subr.bf16.mxu0 0
    %616 = vmatpush1.bf16.msra.mxu0 0
    %617 = vmatprep.subr.bf16.mxu0 0
    %618 = vmatpush1.bf16.msra.mxu0 0
    %619 = vmatprep.subr.bf16.mxu0 0
    %620 = vmatpush1.bf16.msra.mxu0 0
    %621 = vmatprep.subr.bf16.mxu0 0
    %622 = vmatpush1.bf16.msra.mxu0 0
    %623 = vmatprep.subr.bf16.mxu0 0
    %624 = vmatpush1.bf16.msra.mxu0 0
    %625 = vmatprep.subr.bf16.mxu0 0
    %626 = vmatpush1.bf16.msra.mxu0 0
    %627 = vmatprep.subr.bf16.mxu0 0
    %628 = vmatpush1.bf16.msra.mxu0 0
    %629 = vmatprep.subr.bf16.mxu0 0
    %630 = vmatpush1.bf16.msra.mxu0 0
    %631 = vmatprep.subr.bf16.mxu0 0
    %632 = vmatpush1.bf16.msra.mxu0 0
    %633 = vmatprep.mubr.bf16.mxu0 0
    %634 = vmatmul.mubr.bf16.gmra.mrb[0].mxu0 %v596
    %v635 = vpop.f32.mrb[0].mxu0
    %v636 = vadd.f32 0.0, %v635
    %v637 = vpop.f32.mrb[0].mxu0
    %v638 = vpop.f32.mrb[0].mxu0
    %v639 = vpop.f32.mrb[0].mxu0
    %640 = vdwg.mxu0
    %v642 = vsel %vm452, %v500, 0
    %644 = vmatprep.subr.bf16.mxu0 0
    %645 = vmatpush1.bf16.msra.mxu0 %v599
    %646 = vmatprep.subr.bf16.mxu0 0
    %647 = vmatpush1.bf16.msra.mxu0 0
    %648 = vmatprep.subr.bf16.mxu0 0
    %649 = vmatpush1.bf16.msra.mxu0 0
    %650 = vmatprep.subr.bf16.mxu0 0
    %651 = vmatpush1.bf16.msra.mxu0 0
    %652 = vmatprep.subr.bf16.mxu0 0
    %653 = vmatpush1.bf16.msra.mxu0 0
    %654 = vmatprep.subr.bf16.mxu0 0
    %655 = vmatpush1.bf16.msra.mxu0 0
    %656 = vmatprep.subr.bf16.mxu0 0
    %657 = vmatpush1.bf16.msra.mxu0 0
    %658 = vmatprep.subr.bf16.mxu0 0
    %659 = vmatpush1.bf16.msra.mxu0 0
    %660 = vmatprep.subr.bf16.mxu0 0
    %661 = vmatpush1.bf16.msra.mxu0 0
    %662 = vmatprep.subr.bf16.mxu0 0
    %663 = vmatpush1.bf16.msra.mxu0 0
    %664 = vmatprep.subr.bf16.mxu0 0
    %665 = vmatpush1.bf16.msra.mxu0 0
    %666 = vmatprep.subr.bf16.mxu0 0
    %667 = vmatpush1.bf16.msra.mxu0 0
    %668 = vmatprep.subr.bf16.mxu0 0
    %669 = vmatpush1.bf16.msra.mxu0 0
    %670 = vmatprep.subr.bf16.mxu0 0
    %671 = vmatpush1.bf16.msra.mxu0 0
    %672 = vmatprep.subr.bf16.mxu0 0
    %673 = vmatpush1.bf16.msra.mxu0 0
    %674 = vmatprep.subr.bf16.mxu0 0
    %675 = vmatpush1.bf16.msra.mxu0 0
    %676 = vmatprep.mubr.bf16.mxu0 0
    %677 = vmatmul.mubr.bf16.gmra.mrb[0].mxu0 %v642
    %v678 = vpop.f32.mrb[0].mxu0
    %v679 = vadd.f32 0.0, %v678
    %v680 = vpop.f32.mrb[0].mxu0
    %v681 = vpop.f32.mrb[0].mxu0
    %v682 = vpop.f32.mrb[0].mxu0
    %683 = vdwg.mxu0
    %685 = vrot.lane.b32.xlu0 %v588, 16
    %v686 = vpop.permute.xlu0 %685
    %689 = vrot.lane.b32.xlu0 %v636, 32
    %v690 = vpop.permute.xlu0 %689
    %693 = vrot.lane.b32.xlu0 %v679, 48
    %v694 = vpop.permute.xlu0 %693
    %v696 = vsel %vm263, %v545, %v686
    %vm697 = vcmask 261120
    %v698 = vsel %vm697, %v696, %v690
    %vm699 = vcmask 392192
    %v700 = vsel %vm699, %v698, %v694
    %v701 = vpack.c.bf16 %v700, %v700
    %v702 = vld [vmem:[#allocation13] sm:$0xf]
    %v703 = vld [vmem:[#allocation13 + $0x4] sm:$0xf]
    %v704 = vld [vmem:[#allocation13 + $0x8] sm:$0xf]
    %v705 = vld [vmem:[#allocation13 + $0xc] sm:$0xf]
    %v706 = vld [vmem:[#allocation13 + $0x10] sm:$0xf]
    %v707 = vld [vmem:[#allocation13 + $0x14] sm:$0xf]
    %v708 = vld [vmem:[#allocation13 + $0x18] sm:$0xf]
    %v709 = vld [vmem:[#allocation13 + $0x1c] sm:$0xf]
    %v718 = vunpack.c.l.b16 %v702
    %v719 = vunpack.c.l.b16 %v703
    %v720 = vunpack.c.l.b16 %v704
    %v721 = vunpack.c.l.b16 %v705
    %v722 = vunpack.c.l.b16 %v706
    %v723 = vunpack.c.l.b16 %v707
    %v724 = vunpack.c.l.b16 %v708
    %v725 = vunpack.c.l.b16 %v709
    %v726 = vpack.c.b16 %v719, %v718
    %v727 = vpack.c.b16 %v721, %v720
    %v728 = vpack.c.b16 %v723, %v722
    %v729 = vpack.c.b16 %v725, %v724
    %v735 = vsel %vm126, %v701, 0
    %737 = vmatprep.subr.bf16.mxu0 0
    %738 = vmatpush1.bf16.msra.mxu0 %v726
    %739 = vmatprep.subr.bf16.mxu0 0
    %740 = vmatpush1.bf16.msra.mxu0 %v727
    %741 = vmatprep.subr.bf16.mxu0 0
    %742 = vmatpush1.bf16.msra.mxu0 %v728
    %743 = vmatprep.subr.bf16.mxu0 0
    %744 = vmatpush1.bf16.msra.mxu0 %v729
    %745 = vmatprep.subr.bf16.mxu0 0
    %746 = vmatpush1.bf16.msra.mxu0 0
    %747 = vmatprep.subr.bf16.mxu0 0
    %748 = vmatpush1.bf16.msra.mxu0 0
    %749 = vmatprep.subr.bf16.mxu0 0
    %750 = vmatpush1.bf16.msra.mxu0 0
    %751 = vmatprep.subr.bf16.mxu0 0
    %752 = vmatpush1.bf16.msra.mxu0 0
    %753 = vmatprep.subr.bf16.mxu0 0
    %754 = vmatpush1.bf16.msra.mxu0 0
    %755 = vmatprep.subr.bf16.mxu0 0
    %756 = vmatpush1.bf16.msra.mxu0 0
    %757 = vmatprep.subr.bf16.mxu0 0
    %758 = vmatpush1.bf16.msra.mxu0 0
    %759 = vmatprep.subr.bf16.mxu0 0
    %760 = vmatpush1.bf16.msra.mxu0 0
    %761 = vmatprep.subr.bf16.mxu0 0
    %762 = vmatpush1.bf16.msra.mxu0 0
    %763 = vmatprep.subr.bf16.mxu0 0
    %764 = vmatpush1.bf16.msra.mxu0 0
    %765 = vmatprep.subr.bf16.mxu0 0
    %766 = vmatpush1.bf16.msra.mxu0 0
    %767 = vmatprep.subr.bf16.mxu0 0
    %768 = vmatpush1.bf16.msra.mxu0 0
    %769 = vmatprep.mubr.bf16.mxu0 0
    %770 = vmatmul.mubr.bf16.gmra.mrb[0].mxu0 %v735
    %v771 = vpop.f32.mrb[0].mxu0
    %v772 = vadd.f32 0.0, %v771
    %v773 = vpop.f32.mrb[0].mxu0
    %v774 = vpop.f32.mrb[0].mxu0
    %v775 = vpop.f32.mrb[0].mxu0
    %776 = vdwg.mxu0
    %v777 = vadd.f32 %v123, %v772
    %v778 = vld [vmem:[#allocation11] sm:$0x1]
    %v779 = vmul.f32 %v777, %v777
    %v780 = vsel %vm126, %v779, 0.0
    %781 = vadd.xlane.f32.xlu0 %v780
    %v782 = vpop.xlane.xlu0 %781
    %v783 = vmul.f32 %v782, %v130
    %v784 = vadd.f32 %v783, 1e-06
    %v785 = vrsqrt.pop %v784
    %v786 = vmul.f32 %v777, %v785
    %v788 = vlaneseq
    %v789 = vshrl.u32 %v788, 7
    %v790 = vsub.s32 0, %v789
    %v791 = vrot.slane %v778, %v790
    %v793 = vmul.f32 %v786, %v791
    %v794 = vpack.c.bf16 %v793, %v793
    %v795 = vld [vmem:[%s9] sm:$0xff]
    %v796 = vld [vmem:[%s9 + $0x8] sm:$0xff]
    %v797 = vld [vmem:[%s9 + $0x10] sm:$0xff]
    %v798 = vld [vmem:[%s9 + $0x18] sm:$0xff]
    %v799 = vld [vmem:[%s9 + $0x20] sm:$0xff]
    %v800 = vld [vmem:[%s9 + $0x28] sm:$0xff]
    %v801 = vld [vmem:[%s9 + $0x30] sm:$0xff]
    %v802 = vld [vmem:[%s9 + $0x38] sm:$0xff]
    %v811 = vunpack.c.l.b16 %v795
    %v812 = vunpack.c.h.b16 %v795
    %v813 = vunpack.c.l.b16 %v796
    %v814 = vunpack.c.h.b16 %v796
    %v815 = vunpack.c.l.b16 %v797
    %v816 = vunpack.c.h.b16 %v797
    %v817 = vunpack.c.l.b16 %v798
    %v818 = vunpack.c.h.b16 %v798
    %v819 = vunpack.c.l.b16 %v799
    %v820 = vunpack.c.h.b16 %v799
    %v821 = vunpack.c.l.b16 %v800
    %v822 = vunpack.c.h.b16 %v800
    %v823 = vunpack.c.l.b16 %v801
    %v824 = vunpack.c.h.b16 %v801
    %v825 = vunpack.c.l.b16 %v802
    %v826 = vunpack.c.h.b16 %v802
    %v827 = vpack.c.b16 %v813, %v811
    %v828 = vpack.c.b16 %v814, %v812
    %v829 = vpack.c.b16 %v817, %v815
    %v830 = vpack.c.b16 %v818, %v816
    %v831 = vpack.c.b16 %v821, %v819
    %v832 = vpack.c.b16 %v822, %v820
    %v833 = vpack.c.b16 %v825, %v823
    %v834 = vpack.c.b16 %v826, %v824
    %v844 = vsel %vm126, %v794, 0
    %846 = vmatprep.subr.bf16.mxu0 %v828
    %847 = vmatpush1.bf16.msra.mxu0 %v827
    %848 = vmatprep.subr.bf16.mxu0 %v830
    %849 = vmatpush1.bf16.msra.mxu0 %v829
    %850 = vmatprep.subr.bf16.mxu0 %v832
    %851 = vmatpush1.bf16.msra.mxu0 %v831
    %852 = vmatprep.subr.bf16.mxu0 %v834
    %853 = vmatpush1.bf16.msra.mxu0 %v833
    %854 = vmatprep.subr.bf16.mxu0 0
    %855 = vmatpush1.bf16.msra.mxu0 0
    %856 = vmatprep.subr.bf16.mxu0 0
    %857 = vmatpush1.bf16.msra.mxu0 0
    %858 = vmatprep.subr.bf16.mxu0 0
    %859 = vmatpush1.bf16.msra.mxu0 0
    %860 = vmatprep.subr.bf16.mxu0 0
    %861 = vmatpush1.bf16.msra.mxu0 0
    %862 = vmatprep.subr.bf16.mxu0 0
    %863 = vmatpush1.bf16.msra.mxu0 0
    %864 = vmatprep.subr.bf16.mxu0 0
    %865 = vmatpush1.bf16.msra.mxu0 0
    %866 = vmatprep.subr.bf16.mxu0 0
    %867 = vmatpush1.bf16.msra.mxu0 0
    %868 = vmatprep.subr.bf16.mxu0 0
    %869 = vmatpush1.bf16.msra.mxu0 0
    %870 = vmatprep.subr.bf16.mxu0 0
    %871 = vmatpush1.bf16.msra.mxu0 0
    %872 = vmatprep.subr.bf16.mxu0 0
    %873 = vmatpush1.bf16.msra.mxu0 0
    %874 = vmatprep.subr.bf16.mxu0 0
    %875 = vmatpush1.bf16.msra.mxu0 0
    %876 = vmatprep.subr.bf16.mxu0 0
    %877 = vmatpush1.bf16.msra.mxu0 0
    %878 = vmatprep.mubr.bf16.mxu0 0
    %879 = vmatmul.mubr.bf16.gmra.mrb[0].mxu0 %v844
    %v880 = vpop.f32.mrb[0].mxu0
    %v881 = vadd.f32 0.0, %v880
    %v882 = vpop.f32.mrb[0].mxu0
    %v883 = vadd.f32 0.0, %v882
    %v884 = vpop.f32.mrb[0].mxu0
    %v885 = vpop.f32.mrb[0].mxu0
    %886 = vdwg.mxu0
    %v887 = vxor.u32 %v881, 2147483648
    %v888 = vmul.f32 %v887, 1.442695
    %v889 = vpow.pop %v888
    %v890 = vadd.f32 %v889, 1.0
    %v891 = vrcp.pop %v890
    %v892 = vmul.f32 1.0, %v891
    %v893 = vmul.f32 %v881, %v892
    %v894 = vmul.f32 %v893, %v883
    %v895 = vpack.c.bf16 %v894, %v894
    %v896 = vld [vmem:[%s10] sm:$0xf]
    %v897 = vld [vmem:[%s10 + $0x4] sm:$0xf]
    %v898 = vld [vmem:[%s10 + $0x8] sm:$0xf]
    %v899 = vld [vmem:[%s10 + $0xc] sm:$0xf]
    %v900 = vld [vmem:[%s10 + $0x10] sm:$0xf]
    %v901 = vld [vmem:[%s10 + $0x14] sm:$0xf]
    %v902 = vld [vmem:[%s10 + $0x18] sm:$0xf]
    %v903 = vld [vmem:[%s10 + $0x1c] sm:$0xf]
    %v904 = vld [vmem:[%s10 + $0x20] sm:$0xf]
    %v905 = vld [vmem:[%s10 + $0x24] sm:$0xf]
    %v906 = vld [vmem:[%s10 + $0x28] sm:$0xf]
    %v907 = vld [vmem:[%s10 + $0x2c] sm:$0xf]
    %v908 = vld [vmem:[%s10 + $0x30] sm:$0xf]
    %v909 = vld [vmem:[%s10 + $0x34] sm:$0xf]
    %v910 = vld [vmem:[%s10 + $0x38] sm:$0xf]
    %v911 = vld [vmem:[%s10 + $0x3c] sm:$0xf]
    %v928 = vunpack.c.l.b16 %v896
    %v929 = vunpack.c.l.b16 %v897
    %v930 = vunpack.c.l.b16 %v898
    %v931 = vunpack.c.l.b16 %v899
    %v932 = vunpack.c.l.b16 %v900
    %v933 = vunpack.c.l.b16 %v901
    %v934 = vunpack.c.l.b16 %v902
    %v935 = vunpack.c.l.b16 %v903
    %v936 = vunpack.c.l.b16 %v904
    %v937 = vunpack.c.l.b16 %v905
    %v938 = vunpack.c.l.b16 %v906
    %v939 = vunpack.c.l.b16 %v907
    %v940 = vunpack.c.l.b16 %v908
    %v941 = vunpack.c.l.b16 %v909
    %v942 = vunpack.c.l.b16 %v910
    %v943 = vunpack.c.l.b16 %v911
    %v944 = vpack.c.b16 %v929, %v928
    %v945 = vpack.c.b16 %v931, %v930
    %v946 = vpack.c.b16 %v933, %v932
    %v947 = vpack.c.b16 %v935, %v934
    %v948 = vpack.c.b16 %v937, %v936
    %v949 = vpack.c.b16 %v939, %v938
    %v950 = vpack.c.b16 %v941, %v940
    %v951 = vpack.c.b16 %v943, %v942
    %960 = vmatprep.subr.bf16.mxu0 0
    %961 = vmatpush1.bf16.msra.mxu0 %v944
    %962 = vmatprep.subr.bf16.mxu0 0
    %963 = vmatpush1.bf16.msra.mxu0 %v945
    %964 = vmatprep.subr.bf16.mxu0 0
    %965 = vmatpush1.bf16.msra.mxu0 %v946
    %966 = vmatprep.subr.bf16.mxu0 0
    %967 = vmatpush1.bf16.msra.mxu0 %v947
    %968 = vmatprep.subr.bf16.mxu0 0
    %969 = vmatpush1.bf16.msra.mxu0 %v948
    %970 = vmatprep.subr.bf16.mxu0 0
    %971 = vmatpush1.bf16.msra.mxu0 %v949
    %972 = vmatprep.subr.bf16.mxu0 0
    %973 = vmatpush1.bf16.msra.mxu0 %v950
    %974 = vmatprep.subr.bf16.mxu0 0
    %975 = vmatpush1.bf16.msra.mxu0 %v951
    %976 = vmatprep.subr.bf16.mxu0 0
    %977 = vmatpush1.bf16.msra.mxu0 0
    %978 = vmatprep.subr.bf16.mxu0 0
    %979 = vmatpush1.bf16.msra.mxu0 0
    %980 = vmatprep.subr.bf16.mxu0 0
    %981 = vmatpush1.bf16.msra.mxu0 0
    %982 = vmatprep.subr.bf16.mxu0 0
    %983 = vmatpush1.bf16.msra.mxu0 0
    %984 = vmatprep.subr.bf16.mxu0 0
    %985 = vmatpush1.bf16.msra.mxu0 0
    %986 = vmatprep.subr.bf16.mxu0 0
    %987 = vmatpush1.bf16.msra.mxu0 0
    %988 = vmatprep.subr.bf16.mxu0 0
    %989 = vmatpush1.bf16.msra.mxu0 0
    %990 = vmatprep.subr.bf16.mxu0 0
    %991 = vmatpush1.bf16.msra.mxu0 0
    %992 = vmatprep.mubr.bf16.mxu0 0
    %993 = vmatmul.mubr.bf16.gmra.mrb[0].mxu0 %v895
    %v994 = vpop.f32.mrb[0].mxu0
    %v995 = vadd.f32 0.0, %v994
    %v996 = vpop.f32.mrb[0].mxu0
    %v997 = vpop.f32.mrb[0].mxu0
    %v998 = vpop.f32.mrb[0].mxu0
    %999 = vdwg.mxu0
    %v1000 = vadd.f32 %v777, %v995
    %v1001 = vsel %vm126, %v1000, %v251
    %1002 = vst [vmem:[#allocation14] sm:$0xff] %v1001
    // Predicated region
    $region74: #{tpu_custom_call.1} parent=1 // pred_check
      _
    $region75: #{tpu_custom_call.1} parent=1 // pred_check_branch
      %1004 = sbr.rel (0) target = $region77
    $region76: #{tpu_custom_call.1} parent=1 // pred_region
      %s1006 = ssub.s32 128, 128
      %1007 = vsyncadd [#allocation4], %s1006
      %s1009 = sshll.u32 [#allocation14], 4
      %s1010 = int_to_ptr.vmem [resolvable:$true] %s1009
      %1012 = dma.vmem_to_hbm [thread:$0]  %s1010, 128, %s11, [#allocation4]
    $region77: #{tpu_custom_call.1} parent=1 // pred_fallthru
      _
    // Predicated region
    $region78: #{tpu_custom_call.1} parent=1 // pred_check
      _
    $region79: #{tpu_custom_call.1} parent=1 // pred_check_branch
      %1014 = sbr.rel (0) target = $region81
    $region80: #{tpu_custom_call.1} parent=1 // pred_region
      %1015 = dma.done [#allocation4], 128
    $region81: #{tpu_custom_call.1} parent=1 // pred_fallthru
      _
    %1016 = vsyncpa [#allocation3], 1
    %1017 = vsyncpa [#allocation6], 1
    %1018 = vsyncpa [#allocation9], 1
    %1019 = vsyncpa [#allocation12], 1
    %1020 = vsyncpa [#allocation4], 1

</llo_original>
